<compile_context>
chip_gen: v5e
topology: v5e:2x2
jax: 0.10.0
libtpu: 0.0.40
codegen_flags: <defaults>
</compile_context>

<pallas_src>
import functools
import math

import jax
import jax.numpy as jnp
from jax.experimental import pallas as pl
from jax.experimental.pallas import tpu as pltpu


_M_INIT = -1e30  # finite init for the running max; avoids (-inf) - (-inf) -> NaN


def _proj_kernel(h_ref, wT_ref, a_src_ref, a_dst_ref, g_ref, s_src_ref, s_dst_ref):
    # g = h @ W^T  (MXU, full-precision f32 so the logits feeding exp() stay
    # accurate even though g itself is stored as bf16 below).
    g = jnp.dot(h_ref[...], wT_ref[...],
                precision=jax.lax.Precision.HIGHEST,
                preferred_element_type=jnp.float32)
    # Attention projections on the VPU (multiply + cross-lane reduce).
    s_src_ref[...] = jnp.sum(g * a_src_ref[...], axis=-1, keepdims=True)
    s_dst_ref[...] = jnp.sum(g * a_dst_ref[...], axis=-1, keepdims=True)
    g_ref[...] = g.astype(g_ref.dtype)


def _attn_kernel(s_src_ref, s_dst_ref, adj_ref, g_ref, out_ref,
                 m_sc, l_sc, acc_sc, *, alpha: float, concat: bool):
    j = pl.program_id(1)

    @pl.when(j == 0)
    def _init():
        m_sc[...] = jnp.full_like(m_sc, _M_INIT)
        l_sc[...] = jnp.zeros_like(l_sc)
        acc_sc[...] = jnp.zeros_like(acc_sc)

    # Logits tile: e[i, j] = LeakyReLU(s_src[i] + s_dst[j]).  Rank-1 broadcast
    # (Tq,1) + (1,Tk): no matmul and no transpose inside the inner loop.
    e = s_src_ref[...] + s_dst_ref[...]
    e = jnp.where(e > 0, e, alpha * e)                       # LeakyReLU(alpha)
    e = jnp.where(adj_ref[...] != 0, e, -jnp.inf)            # mask non-edges

    m_prev = m_sc[...]
    m_new = jnp.maximum(m_prev, jnp.max(e, axis=1, keepdims=True))  # always finite
    corr = jnp.exp(m_prev - m_new)
    p = jnp.exp(e - m_new)                                   # masked -> exp(-inf) = 0
    l_sc[...] = corr * l_sc[...] + jnp.sum(p, axis=1, keepdims=True)
    acc_sc[...] = corr * acc_sc[...] + jnp.dot(
        p.astype(g_ref.dtype), g_ref[...], preferred_element_type=jnp.float32)
    m_sc[...] = m_new

    @pl.when(j == pl.num_programs(1) - 1)
    def _finalize():
        h_prime = acc_sc[...] * pl.reciprocal(l_sc[...], approx=True)
        if concat:
            # ELU.  exp(min(x,0)) - 1 instead of expm1 (Mosaic lowering of
            # expm1 is not guaranteed); accuracy delta near 0 is < 1e-7.
            h_prime = jnp.where(h_prime > 0, h_prime,
                                jnp.exp(jnp.minimum(h_prime, 0.0)) - 1.0)
        out_ref[...] = h_prime.astype(out_ref.dtype)


def _round_up(x: int, m: int) -> int:
    return (x + m - 1) // m * m


def gat_forward(h, W, attn_w, adj, *, alpha: float = 0.2, concat: bool = True,
                block_n: int = 128, matmul_dtype=jnp.bfloat16):
    """GAT layer forward.

    h      : [N, Fin]     node features
    W      : [Fout, Fin]  nn.Linear(in, out, bias=False).weight
    attn_w : [1, 2*Fout]  nn.Linear(2*out, 1, bias=False).weight
    adj    : [N, N]       adjacency; nonzero = edge (any real/int dtype)
    """
    N, Fin = h.shape
    Fout = W.shape[0]
    assert attn_w.shape == (1, 2 * Fout)
    assert adj.shape == (N, N)

    wT = jnp.asarray(W, jnp.float32).T                       # [Fin, Fout]
    a_src = jnp.asarray(attn_w[:, :Fout], jnp.float32)       # [1, Fout] -> applies to g_i
    a_dst = jnp.asarray(attn_w[:, Fout:], jnp.float32)       # [1, Fout] -> applies to g_j

    # Pad node dim so the grid tiles evenly; padded nodes have no edges and
    # are sliced off at the end.  For best perf Fout should be a multiple of
    # 128 (lane-dense output tiles).
    Np = _round_up(N, block_n)
    h_p = jnp.pad(jnp.asarray(h, jnp.float32), ((0, Np - N), (0, 0)))
    adj_i8 = jnp.pad((adj != 0).astype(jnp.int8), ((0, Np - N), (0, Np - N)))
    n_tiles = Np // block_n

    # ---- prologue: g (bf16), s_src, s_dst (f32) -------------------------
    g, s_src, s_dst = pl.pallas_call(
        _proj_kernel,
        out_shape=(
            jax.ShapeDtypeStruct((Np, Fout), matmul_dtype),
            jax.ShapeDtypeStruct((Np, 1), jnp.float32),
            jax.ShapeDtypeStruct((Np, 1), jnp.float32),
        ),
        grid_spec=pltpu.PrefetchScalarGridSpec(
            num_scalar_prefetch=0,
            grid=(n_tiles,),
            in_specs=[
                pl.BlockSpec((block_n, Fin), lambda i: (i, 0)),
                pl.BlockSpec((Fin, Fout), lambda i: (0, 0)),
                pl.BlockSpec((1, Fout), lambda i: (0, 0)),
                pl.BlockSpec((1, Fout), lambda i: (0, 0)),
            ],
            out_specs=(
                pl.BlockSpec((block_n, Fout), lambda i: (i, 0)),
                pl.BlockSpec((block_n, 1), lambda i: (i, 0)),
                pl.BlockSpec((block_n, 1), lambda i: (i, 0)),
            ),
        ),
        compiler_params=pltpu.CompilerParams(
            dimension_semantics=("parallel",)),
    )(h_p, wT, a_src, a_dst)

    # Lane-dense [1, Np] row of destination logits (contiguous reshape in the
    # wrapper = layout plumbing) so the inner loop never transposes.
    s_dst_row = s_dst.reshape(1, Np)

    # ---- flash-style masked softmax + attention @ g ---------------------
    kernel = functools.partial(_attn_kernel, alpha=float(alpha), concat=bool(concat))
    out = pl.pallas_call(
        kernel,
        out_shape=jax.ShapeDtypeStruct((Np, Fout), jnp.float32),
        grid_spec=pltpu.PrefetchScalarGridSpec(
            num_scalar_prefetch=0,
            grid=(n_tiles, n_tiles),                          # (query, key) tiles
            in_specs=[
                pl.BlockSpec((block_n, 1), lambda i, j: (i, 0)),        # s_src
                pl.BlockSpec((1, block_n), lambda i, j: (0, j)),        # s_dst row
                pl.BlockSpec((block_n, block_n), lambda i, j: (i, j)),  # adj (int8)
                pl.BlockSpec((block_n, Fout), lambda i, j: (j, 0)),     # g_j (bf16)
            ],
            out_specs=pl.BlockSpec((block_n, Fout), lambda i, j: (i, 0)),
            scratch_shapes=[
                pltpu.VMEM((block_n, 1), jnp.float32),     # running max
                pltpu.VMEM((block_n, 1), jnp.float32),     # running sum
                pltpu.VMEM((block_n, Fout), jnp.float32),  # f32 accumulator
            ],
        ),
        compiler_params=pltpu.CompilerParams(
            dimension_semantics=("parallel", "arbitrary")),
    )(s_src, s_dst_row, adj_i8, g)

    return out[:N]


if __name__ == "__main__":
    N_NODES = 200          # not a multiple of 128 -> exercises the padding path
    IN_FEATURES = 64
    OUT_FEATURES = 128     # lane-dense output tiles
    ALPHA = 0.2
    CONCAT = True

    key = jax.random.PRNGKey(0)
    k_h, k_w, k_a, k_adj = jax.random.split(key, 4)

    def xavier_uniform(k, shape, gain):
        fan_out, fan_in = shape            # torch Linear weight layout [out, in]
        bound = gain * math.sqrt(6.0 / (fan_in + fan_out))
        return jax.random.uniform(k, shape, jnp.float32, -bound, bound)

    W = xavier_uniform(k_w, (OUT_FEATURES, IN_FEATURES), gain=1.414)      # [Fout, Fin]
    attn_w = xavier_uniform(k_a, (1, 2 * OUT_FEATURES), gain=1.414)       # [1, 2*Fout]

    h = jax.random.normal(k_h, (N_NODES, IN_FEATURES), jnp.float32)
    adj = jax.random.uniform(k_adj, (N_NODES, N_NODES)) > 0.5
    adj = jnp.logical_or(adj, jnp.eye(N_NODES, dtype=bool))               # self-loops
    adj = adj.astype(jnp.int8)

    out = gat_forward(h, W, attn_w, adj, alpha=ALPHA, concat=CONCAT)
    out = jax.block_until_ready(out)

    # Pure-JAX f32 reference mirroring the PyTorch forward exactly.
    hi = jax.lax.Precision.HIGHEST
    g_ref = jnp.dot(h, W.T, precision=hi)
    a_src = attn_w[:, :OUT_FEATURES]
    a_dst = attn_w[:, OUT_FEATURES:]
    e_ref = jnp.dot(g_ref, a_src.T, precision=hi) + jnp.dot(g_ref, a_dst.T, precision=hi).T
    e_ref = jnp.where(e_ref > 0, e_ref, ALPHA * e_ref)
    e_ref = jnp.where(adj == 0, -jnp.inf, e_ref)
    att_ref = jax.nn.softmax(e_ref, axis=1)
    ref = jnp.dot(att_ref, g_ref, precision=hi)
    if CONCAT:
        ref = jnp.where(ref > 0, ref, jnp.expm1(ref))

    assert out.shape == (N_NODES, OUT_FEATURES)
    assert not bool(jnp.any(jnp.isnan(out)))
    # Tolerance covers the bf16 operands of the attention @ g matmul (f32
    # accumulation) and the EUP approx reciprocal; everything that feeds exp()
    # (g, logits, softmax) is computed in f32.
    assert jnp.allclose(out, ref, atol=5e-2, rtol=5e-2), \
        float(jnp.max(jnp.abs(out - ref)))
    print("KERNEL_OK")
</pallas_src>

<mosaic_0001>
module attributes {stable_mosaic.version = 11 : i64} {
  func.func @_proj_kernel(%arg0: i32, %arg1: memref<128x64xf32, #tpu.memory_space<vmem>>, %arg2: memref<64x128xf32, #tpu.memory_space<vmem>>, %arg3: memref<1x128xf32, #tpu.memory_space<vmem>>, %arg4: memref<1x128xf32, #tpu.memory_space<vmem>>, %arg5: memref<128x128xbf16, #tpu.memory_space<vmem>>, %arg6: memref<128x1xf32, #tpu.memory_space<vmem>>, %arg7: memref<128x1xf32, #tpu.memory_space<vmem>>) attributes {dimension_semantics = [#tpu.dimension_semantics<parallel>], iteration_bounds = array<i64: 2>, scalar_prefetch = 0 : i64, scratch_operands = 0 : i64, tpu.core_type = #tpu.core_type<tc>, window_params = [{transform_indices = @transform_0, window_bounds = array<i64: 128, 64>}, {pipeline_mode = #tpu.pipeline_mode<synchronous>, transform_indices = @transform_1, window_bounds = array<i64: 64, 128>}, {pipeline_mode = #tpu.pipeline_mode<synchronous>, transform_indices = @transform_2, window_bounds = array<i64: 1, 128>}, {pipeline_mode = #tpu.pipeline_mode<synchronous>, transform_indices = @transform_3, window_bounds = array<i64: 1, 128>}, {transform_indices = @transform_4, window_bounds = array<i64: 128, 128>}, {transform_indices = @transform_5, window_bounds = array<i64: 128, 1>}, {transform_indices = @transform_6, window_bounds = array<i64: 128, 1>}]} {
    %c0 = arith.constant 0 : index
    %c0_0 = arith.constant 0 : index
    %0 = vector.load %arg1[%c0, %c0_0] : memref<128x64xf32, #tpu.memory_space<vmem>>, vector<128x64xf32>
    %c0_1 = arith.constant 0 : index
    %c0_2 = arith.constant 0 : index
    %1 = vector.load %arg2[%c0_1, %c0_2] : memref<64x128xf32, #tpu.memory_space<vmem>>, vector<64x128xf32>
    %cst = arith.constant dense<0.000000e+00> : vector<128x128xf32>
    %2 = tpu.matmul %0, %1, %cst {dimension_numbers = #tpu.dot_dimension_numbers<[1], [0], [0], [1], [0, 0, 1, 1], [], []>, precision = #tpu.contract_precision<fp32>} : vector<128x64xf32>, vector<64x128xf32>, vector<128x128xf32> -> vector<128x128xf32>
    %c0_3 = arith.constant 0 : index
    %c0_4 = arith.constant 0 : index
    %3 = vector.load %arg3[%c0_3, %c0_4] : memref<1x128xf32, #tpu.memory_space<vmem>>, vector<1x128xf32>
    %4 = vector.broadcast %3 : vector<1x128xf32> to vector<128x128xf32>
    %5 = arith.mulf %2, %4 : vector<128x128xf32>
    %cst_5 = arith.constant dense<0.000000e+00> : vector<128xf32>
    %6 = vector.multi_reduction <add>, %5, %cst_5 [1] : vector<128x128xf32> to vector<128xf32>
    %7 = vector.shape_cast %6 : vector<128xf32> to vector<128x1xf32>
    %c0_6 = arith.constant 0 : index
    %c0_7 = arith.constant 0 : index
    %8 = vector.load %arg6[%c0_6, %c0_7] : memref<128x1xf32, #tpu.memory_space<vmem>>, vector<128x1xf32>
    tpu.vector_store %arg6[%c0_6, %c0_7], %7 {strides = array<i32>} : memref<128x1xf32, #tpu.memory_space<vmem>>, vector<128x1xf32>,
    %c0_8 = arith.constant 0 : index
    %c0_9 = arith.constant 0 : index
    %9 = vector.load %arg4[%c0_8, %c0_9] : memref<1x128xf32, #tpu.memory_space<vmem>>, vector<1x128xf32>
    %10 = vector.broadcast %9 : vector<1x128xf32> to vector<128x128xf32>
    %11 = arith.mulf %2, %10 : vector<128x128xf32>
    %cst_10 = arith.constant dense<0.000000e+00> : vector<128xf32>
    %12 = vector.multi_reduction <add>, %11, %cst_10 [1] : vector<128x128xf32> to vector<128xf32>
    %13 = vector.shape_cast %12 : vector<128xf32> to vector<128x1xf32>
    %c0_11 = arith.constant 0 : index
    %c0_12 = arith.constant 0 : index
    %14 = vector.load %arg7[%c0_11, %c0_12] : memref<128x1xf32, #tpu.memory_space<vmem>>, vector<128x1xf32>
    tpu.vector_store %arg7[%c0_11, %c0_12], %13 {strides = array<i32>} : memref<128x1xf32, #tpu.memory_space<vmem>>, vector<128x1xf32>,
    %15 = arith.truncf %2 : vector<128x128xf32> to vector<128x128xbf16>
    %c0_13 = arith.constant 0 : index
    %c0_14 = arith.constant 0 : index
    %16 = vector.load %arg5[%c0_13, %c0_14] : memref<128x128xbf16, #tpu.memory_space<vmem>>, vector<128x128xbf16>
    tpu.vector_store %arg5[%c0_13, %c0_14], %15 {strides = array<i32>} : memref<128x128xbf16, #tpu.memory_space<vmem>>, vector<128x128xbf16>,
    return
  }
  func.func @transform_0(%arg0: i32) -> (i32, i32) {
    %c0_i32 = arith.constant 0 : i32
    %c0_i32_0 = arith.constant 0 : i32
    return %arg0, %c0_i32 : i32, i32
  }
  func.func @transform_1(%arg0: i32) -> (i32, i32) {
    %c0_i32 = arith.constant 0 : i32
    %c0_i32_0 = arith.constant 0 : i32
    %c0_i32_1 = arith.constant 0 : i32
    return %c0_i32, %c0_i32_0 : i32, i32
  }
  func.func @transform_2(%arg0: i32) -> (i32, i32) {
    %c0_i32 = arith.constant 0 : i32
    %c0_i32_0 = arith.constant 0 : i32
    %c0_i32_1 = arith.constant 0 : i32
    return %c0_i32, %c0_i32_0 : i32, i32
  }
  func.func @transform_3(%arg0: i32) -> (i32, i32) {
    %c0_i32 = arith.constant 0 : i32
    %c0_i32_0 = arith.constant 0 : i32
    %c0_i32_1 = arith.constant 0 : i32
    return %c0_i32, %c0_i32_0 : i32, i32
  }
  func.func @transform_4(%arg0: i32) -> (i32, i32) {
    %c0_i32 = arith.constant 0 : i32
    %c0_i32_0 = arith.constant 0 : i32
    return %arg0, %c0_i32 : i32, i32
  }
  func.func @transform_5(%arg0: i32) -> (i32, i32) {
    %c0_i32 = arith.constant 0 : i32
    %c0_i32_0 = arith.constant 0 : i32
    return %arg0, %c0_i32 : i32, i32
  }
  func.func @transform_6(%arg0: i32) -> (i32, i32) {
    %c0_i32 = arith.constant 0 : i32
    %c0_i32_0 = arith.constant 0 : i32
    return %arg0, %c0_i32 : i32, i32
  }
}

</mosaic_0001>

<llo_original>
// kernel: tpu_custom_call.1
$region0: #{tpu_custom_call.1}
  #allocation0 [shape = 'u32[]', space=smem, size = 0x4, offset = 0x4, fixed_abs, tag = 'smem constant byte address 0x4 - core index']
  #allocation1 [shape = 'u32[72,128]{1,0:T(1,128)}', space=vmem, size = 0x9000, scoped, tag = 'internal scratch']
  %s0 = inlined_call_operand.vmem [shape: f32[256,64], index: 0, kind: input, shape index: {}]
  %s1 = inlined_call_operand.vmem [shape: f32[64,128], index: 1, kind: input, shape index: {}]
  %s2 = inlined_call_operand.vmem [shape: f32[1,128], index: 2, kind: input, shape index: {}]
  %s3 = inlined_call_operand.vmem [shape: f32[1,128], index: 3, kind: input, shape index: {}]
  %s4 = inlined_call_operand.hbm [shape: bf16[256,128], index: 4, kind: output, shape index: {0}]
  %s5 = inlined_call_operand.vmem [shape: f32[256,1], index: 5, kind: output, shape index: {1}]
  %s6 = inlined_call_operand.vmem [shape: f32[256,1], index: 6, kind: output, shape index: {2}]
  %7 = xla_tuple %s4, %s5, %s6
  %s8 = sld [smem:[#allocation0]]
  $region65: #{tpu_custom_call.1} parent=0
    _
  %s10 = ssub.s32 1, %s8
  %s11 = scalar_select 0, %s10, %s8
  $region1: #{tpu_custom_call.1} parent=0
    #allocation2 [shape = 'u8[65536]{0}', space=vmem, size = 0x10000, scoped, tag = 'output window, operand 0']
    #allocation3 [shape = 's32[2]{0}', space=sflag, size = 0x8, scoped, tag = 'scoped memory for tpu_custom_call.1']
    %12 = vsyncpa [#allocation3], 0
    %s13 = scalar_lea.sflag [#allocation3], 1
    %14 = vsyncpa %s13, 0
    loop: start=0, step=1, limit=4
    $region2: #{tpu_custom_call.1} parent=1 // loop_pre_header
      _
    $region3: #{tpu_custom_call.1} parent=1 // loop_header
      %s16 = sphi 0, %s20
      %p17 = scmp.ge.s32.totalorder %s16, 4
      %s26 = sphi 0, %s28
      %s29 = sphi 0, %s26
      %s30 = sphi 0, %s29
      %s46 = sphi 0, %s30
      %s50 = sphi 0, %s50
      %s52 = sphi 0, %s50
      %s53 = sphi 0, %s52
      %s67 = sphi 0, %s53
      %s71 = sphi 0, %s71
      %s73 = sphi 0, %s71
      %s74 = sphi 0, %s73
      %s88 = sphi 0, %s74
      %s92 = sphi 0, %s92
      %s94 = sphi 0, %s92
      %s95 = sphi 0, %s94
      %s109 = sphi 0, %s95
      %s115 = sphi 0, %s117
      %s118 = sphi 0, %s115
      %s119 = sphi 0, %s118
      %s135 = sphi 0, %s119
      %s141 = sphi 0, %s143
      %s144 = sphi 0, %s141
      %s145 = sphi 0, %s144
      %s161 = sphi 0, %s145
      %s167 = sphi 0, %s169
      %s170 = sphi 0, %s167
      %s171 = sphi 0, %s170
      %s187 = sphi 0, %s171
    $region4: #{tpu_custom_call.1} parent=1 // loop_header_branch
      %19 = sbr.rel (%p17) target = $region8
    $region5: #{tpu_custom_call.1} parent=1 // loop_body
      %s21 = ssub.s32 %s16, 1
      %s22 = ssub.s32 %s16, 2
      %s23 = sadd.s32 %s16, 1
      %s24 = ssub.s32 %s16, %s23
      %p25 = scmp.eq.s32.totalorder %s24, 0
      %s27 = sadd.s32 %s26, 1
      %s28 = scalar_select %p25, %s26, %s27
      %p31 = pneg %p25
      %p32 = scmp.eq.s32.totalorder %s16, 1
      %p33 = por %p31, %p32
      %p34 = scmp.ne.s32.totalorder %s26, %s29
      %p35 = scmp.eq.s32.totalorder %s16, 0
      %p36 = por %p34, %p35
      %p37 = scmp.ne.s32.totalorder %s26, %s29
      %p38 = scmp.eq.s32.totalorder %s21, 1
      %p39 = por %p37, %p38
      %p40 = scmp.ne.s32.totalorder %s29, %s30
      %p41 = scmp.eq.s32.totalorder %s21, 0
      %p42 = por %p40, %p41
      %p43 = scmp.ne.s32.totalorder %s29, %s30
      %p44 = scmp.eq.s32.totalorder %s22, 1
      %p45 = por %p43, %p44
      %p47 = scmp.ne.s32.totalorder %s30, %s46
      %p48 = scmp.eq.s32.totalorder %s22, 0
      %p49 = por %p47, %p48
      %s51 = sadd.s32 %s50, 1
      %p54 = scmp.eq.s32.totalorder %s16, 1
      %p55 = scmp.ne.s32.totalorder %s50, %s52
      %p56 = scmp.eq.s32.totalorder %s16, 0
      %p57 = por %p55, %p56
      %p58 = scmp.ne.s32.totalorder %s50, %s52
      %p59 = scmp.eq.s32.totalorder %s21, 1
      %p60 = por %p58, %p59
      %p61 = scmp.ne.s32.totalorder %s52, %s53
      %p62 = scmp.eq.s32.totalorder %s21, 0
      %p63 = por %p61, %p62
      %p64 = scmp.ne.s32.totalorder %s52, %s53
      %p65 = scmp.eq.s32.totalorder %s22, 1
      %p66 = por %p64, %p65
      %p68 = scmp.ne.s32.totalorder %s53, %s67
      %p69 = scmp.eq.s32.totalorder %s22, 0
      %p70 = por %p68, %p69
      %s72 = sadd.s32 %s71, 1
      %p75 = scmp.eq.s32.totalorder %s16, 1
      %p76 = scmp.ne.s32.totalorder %s71, %s73
      %p77 = scmp.eq.s32.totalorder %s16, 0
      %p78 = por %p76, %p77
      %p79 = scmp.ne.s32.totalorder %s71, %s73
      %p80 = scmp.eq.s32.totalorder %s21, 1
      %p81 = por %p79, %p80
      %p82 = scmp.ne.s32.totalorder %s73, %s74
      %p83 = scmp.eq.s32.totalorder %s21, 0
      %p84 = por %p82, %p83
      %p85 = scmp.ne.s32.totalorder %s73, %s74
      %p86 = scmp.eq.s32.totalorder %s22, 1
      %p87 = por %p85, %p86
      %p89 = scmp.ne.s32.totalorder %s74, %s88
      %p90 = scmp.eq.s32.totalorder %s22, 0
      %p91 = por %p89, %p90
      %s93 = sadd.s32 %s92, 1
      %p96 = scmp.eq.s32.totalorder %s16, 1
      %p97 = scmp.ne.s32.totalorder %s92, %s94
      %p98 = scmp.eq.s32.totalorder %s16, 0
      %p99 = por %p97, %p98
      %p100 = scmp.ne.s32.totalorder %s92, %s94
      %p101 = scmp.eq.s32.totalorder %s21, 1
      %p102 = por %p100, %p101
      %p103 = scmp.ne.s32.totalorder %s94, %s95
      %p104 = scmp.eq.s32.totalorder %s21, 0
      %p105 = por %p103, %p104
      %p106 = scmp.ne.s32.totalorder %s94, %s95
      %p107 = scmp.eq.s32.totalorder %s22, 1
      %p108 = por %p106, %p107
      %p110 = scmp.ne.s32.totalorder %s95, %s109
      %p111 = scmp.eq.s32.totalorder %s22, 0
      %p112 = por %p110, %p111
      %s113 = ssub.s32 %s16, %s23
      %p114 = scmp.eq.s32.totalorder %s113, 0
      %s116 = sadd.s32 %s115, 1
      %s117 = scalar_select %p114, %s115, %s116
      %p120 = pneg %p114
      %p121 = scmp.eq.s32.totalorder %s16, 1
      %p122 = por %p120, %p121
      %p123 = scmp.ne.s32.totalorder %s115, %s118
      %p124 = scmp.eq.s32.totalorder %s16, 0
      %p125 = por %p123, %p124
      %p126 = scmp.ne.s32.totalorder %s115, %s118
      %p127 = scmp.eq.s32.totalorder %s21, 1
      %p128 = por %p126, %p127
      %p129 = scmp.ne.s32.totalorder %s118, %s119
      %p130 = scmp.eq.s32.totalorder %s21, 0
      %p131 = por %p129, %p130
      %p132 = scmp.ne.s32.totalorder %s118, %s119
      %p133 = scmp.eq.s32.totalorder %s22, 1
      %p134 = por %p132, %p133
      %p136 = scmp.ne.s32.totalorder %s119, %s135
      %p137 = scmp.eq.s32.totalorder %s22, 0
      %p138 = por %p136, %p137
      %s139 = ssub.s32 %s16, %s23
      %p140 = scmp.eq.s32.totalorder %s139, 0
      %s142 = sadd.s32 %s141, 1
      %s143 = scalar_select %p140, %s141, %s142
      %p146 = pneg %p140
      %p147 = scmp.eq.s32.totalorder %s16, 1
      %p148 = por %p146, %p147
      %p149 = scmp.ne.s32.totalorder %s141, %s144
      %p150 = scmp.eq.s32.totalorder %s16, 0
      %p151 = por %p149, %p150
      %p152 = scmp.ne.s32.totalorder %s141, %s144
      %p153 = scmp.eq.s32.totalorder %s21, 1
      %p154 = por %p152, %p153
      %p155 = scmp.ne.s32.totalorder %s144, %s145
      %p156 = scmp.eq.s32.totalorder %s21, 0
      %p157 = por %p155, %p156
      %p158 = scmp.ne.s32.totalorder %s144, %s145
      %p159 = scmp.eq.s32.totalorder %s22, 1
      %p160 = por %p158, %p159
      %p162 = scmp.ne.s32.totalorder %s145, %s161
      %p163 = scmp.eq.s32.totalorder %s22, 0
      %p164 = por %p162, %p163
      %s165 = ssub.s32 %s16, %s23
      %p166 = scmp.eq.s32.totalorder %s165, 0
      %s168 = sadd.s32 %s167, 1
      %s169 = scalar_select %p166, %s167, %s168
      %p172 = pneg %p166
      %p173 = scmp.eq.s32.totalorder %s16, 1
      %p174 = por %p172, %p173
      %p175 = scmp.ne.s32.totalorder %s167, %s170
      %p176 = scmp.eq.s32.totalorder %s16, 0
      %p177 = por %p175, %p176
      %p178 = scmp.ne.s32.totalorder %s167, %s170
      %p179 = scmp.eq.s32.totalorder %s21, 1
      %p180 = por %p178, %p179
      %p181 = scmp.ne.s32.totalorder %s170, %s171
      %p182 = scmp.eq.s32.totalorder %s21, 0
      %p183 = por %p181, %p182
      %p184 = scmp.ne.s32.totalorder %s170, %s171
      %p185 = scmp.eq.s32.totalorder %s22, 1
      %p186 = por %p184, %p185
      %p188 = scmp.ne.s32.totalorder %s171, %s187
      %p189 = scmp.eq.s32.totalorder %s22, 0
      %p190 = por %p188, %p189
      %p191 = scmp.le.s32.totalorder 1, %s16
      %p192 = scmp.lt.s32.totalorder %s16, 3
      %p193 = pnand %p191, %p192
      %p194 = pneg %p193
      // Predicated region
      $region9: #{tpu_custom_call.1} parent=5 // pred_check
        _
      $region10: #{tpu_custom_call.1} parent=5 // pred_check_branch
        %196 = sbr.rel (%p193) target = $region12
      $region11: #{tpu_custom_call.1} parent=5 // pred_region
        %s197 = ssub.s32 %s16, 1
        // Predicated region
        $region13: #{tpu_custom_call.1} parent=11 // pred_check
          %p198 = pneg %p63
        $region14: #{tpu_custom_call.1} parent=11 // pred_check_branch
          %200 = sbr.rel (%p198) target = $region16
        $region15: #{tpu_custom_call.1} parent=11 // pred_region
          _
        $region16: #{tpu_custom_call.1} parent=11 // pred_fallthru
          _
        // Predicated region
        $region17: #{tpu_custom_call.1} parent=11 // pred_check
          %p201 = pneg %p84
        $region18: #{tpu_custom_call.1} parent=11 // pred_check_branch
          %203 = sbr.rel (%p201) target = $region20
        $region19: #{tpu_custom_call.1} parent=11 // pred_region
          _
        $region20: #{tpu_custom_call.1} parent=11 // pred_fallthru
          _
        // Predicated region
        $region21: #{tpu_custom_call.1} parent=11 // pred_check
          %p204 = pneg %p105
        $region22: #{tpu_custom_call.1} parent=11 // pred_check_branch
          %206 = sbr.rel (%p204) target = $region24
        $region23: #{tpu_custom_call.1} parent=11 // pred_region
          _
        $region24: #{tpu_custom_call.1} parent=11 // pred_fallthru
          _
      $region12: #{tpu_custom_call.1} parent=5 // pred_fallthru
        _
      %p207 = scmp.lt.s32.totalorder %s16, 2
      // Predicated region
      $region25: #{tpu_custom_call.1} parent=5 // pred_check
        %p208 = pneg %p207
      $region26: #{tpu_custom_call.1} parent=5 // pred_check_branch
        %210 = sbr.rel (%p208) target = $region28
      $region27: #{tpu_custom_call.1} parent=5 // pred_region
        // Predicated region
        $region29: #{tpu_custom_call.1} parent=27 // pred_check
          %p211 = pneg %p36
        $region30: #{tpu_custom_call.1} parent=27 // pred_check_branch
          %213 = sbr.rel (%p211) target = $region32
        $region31: #{tpu_custom_call.1} parent=27 // pred_region
          %s214 = smul.u32 16, %s16
          %p215 = scmp.lt.s32.totalorder %s214, 31
          %s216 = scalar_select %p215, %s214, 31
          %s217 = smul.addr %s216, 8
          %s218 = scalar_lea.vmem %s0, %s217
          %s219 = smul.u32 16, %s16
        $region32: #{tpu_custom_call.1} parent=27 // pred_fallthru
          _
      $region28: #{tpu_custom_call.1} parent=5 // pred_fallthru
        _
      %p220 = scmp.le.s32.totalorder 1, %s16
      %p221 = scmp.lt.s32.totalorder %s16, 3
      %p222 = pnand %p220, %p221
      %p223 = pneg %p222
      // Predicated region
      $region33: #{tpu_custom_call.1} parent=5 // pred_check
        _
      $region34: #{tpu_custom_call.1} parent=5 // pred_check_branch
        %225 = sbr.rel (%p222) target = $region36
      $region35: #{tpu_custom_call.1} parent=5 // pred_region
        %s226 = ssub.s32 %s16, 1
        %s227 = smul.u32 16, %s21
        %p228 = scmp.lt.s32.totalorder %s227, 31
        %s229 = scalar_select %p228, %s227, 31
        %s230 = smul.addr %s229, 8
        %s231 = scalar_lea.vmem %s0, %s230
        %p232 = pneg %p42
        %p233 = pneg %p39
        %p234 = pneg %p63
        %p235 = pneg %p60
        %p236 = pneg %p84
        %p237 = pneg %p81
        %p238 = pneg %p105
        %p239 = pneg %p102
        %p240 = pneg %p131
        %p241 = pneg %p128
        %s242 = sand.u32 %s118, 1
        %s243 = scalar_lea.sflag [#allocation3], %s242
        %s244 = sand.u32 %s118, 1
        %s245 = smul.addr %s244, 64
        %s246 = scalar_lea.vmem [#allocation2], %s245
        %p247 = pneg %p157
        %p248 = pneg %p154
        %s249 = smul.u32 16, %s21
        %p250 = scmp.lt.s32.totalorder %s249, 31
        %s251 = scalar_select %p250, %s249, 31
        %s252 = smul.addr %s251, 8
        %s253 = scalar_lea.vmem %s5, %s252
        %p254 = pneg %p183
        %p255 = pneg %p180
        %s256 = smul.u32 16, %s21
        %p257 = scmp.lt.s32.totalorder %s256, 31
        %s258 = scalar_select %p257, %s256, 31
        %s259 = smul.addr %s258, 8
        %s260 = scalar_lea.vmem %s6, %s259
        %s261 = smul.u32 16, %s21
        %p262 = scmp.lt.s32.totalorder %s261, 31
        %s263 = scalar_select %p262, %s261, 31
        %s264 = smul.addr %s263, 8
        %s265 = scalar_lea.vmem %s0, %s264
        %s266 = smul.u32 16, %s21
        %s267 = smul.u32 16, %s21
        %s268 = smul.u32 16, %s21
        %p269 = scmp.lt.s32.totalorder %s268, 31
        %s270 = scalar_select %p269, %s268, 31
        %s271 = smul.addr %s270, 8
        %s272 = scalar_lea.vmem %s5, %s271
        %s273 = smul.u32 16, %s21
        %s274 = smul.u32 16, %s21
        %p275 = scmp.lt.s32.totalorder %s274, 31
        %s276 = scalar_select %p275, %s274, 31
        %s277 = smul.addr %s276, 8
        %s278 = scalar_lea.vmem %s6, %s277
        %s279 = smul.u32 16, %s21
        %v280 = vld [vmem:[%s265] sm:$0xff]
        %v281 = vld [vmem:[%s265 + $0x8] sm:$0xff]
        %v282 = vld [vmem:[%s265 + $0x10] sm:$0xff]
        %v283 = vld [vmem:[%s265 + $0x18] sm:$0xff]
        %v284 = vld [vmem:[%s265 + $0x20] sm:$0xff]
        %v285 = vld [vmem:[%s265 + $0x28] sm:$0xff]
        %v286 = vld [vmem:[%s265 + $0x30] sm:$0xff]
        %v287 = vld [vmem:[%s265 + $0x38] sm:$0xff]
        %v288 = vld [vmem:[%s265 + $0x40] sm:$0xff]
        %v289 = vld [vmem:[%s265 + $0x48] sm:$0xff]
        %v290 = vld [vmem:[%s265 + $0x50] sm:$0xff]
        %v291 = vld [vmem:[%s265 + $0x58] sm:$0xff]
        %v292 = vld [vmem:[%s265 + $0x60] sm:$0xff]
        %v293 = vld [vmem:[%s265 + $0x68] sm:$0xff]
        %v294 = vld [vmem:[%s265 + $0x70] sm:$0xff]
        %v295 = vld [vmem:[%s265 + $0x78] sm:$0xff]
        %v296 = vld [vmem:[%s1] sm:$0xff]
        %v297 = vld [vmem:[%s1 + $0x8] sm:$0xff]
        %v298 = vld [vmem:[%s1 + $0x10] sm:$0xff]
        %v299 = vld [vmem:[%s1 + $0x18] sm:$0xff]
        %v300 = vld [vmem:[%s1 + $0x20] sm:$0xff]
        %v301 = vld [vmem:[%s1 + $0x28] sm:$0xff]
        %v302 = vld [vmem:[%s1 + $0x30] sm:$0xff]
        %v303 = vld [vmem:[%s1 + $0x38] sm:$0xff]
        %vm304 = vcmask 523264
        %v306 = vsel %vm304, %v280, 0
        %v309 = vsel %vm304, %v281, 0
        %v312 = vsel %vm304, %v282, 0
        %v315 = vsel %vm304, %v283, 0
        %v318 = vsel %vm304, %v284, 0
        %v321 = vsel %vm304, %v285, 0
        %v324 = vsel %vm304, %v286, 0
        %v327 = vsel %vm304, %v287, 0
        %v330 = vsel %vm304, %v288, 0
        %v333 = vsel %vm304, %v289, 0
        %v336 = vsel %vm304, %v290, 0
        %v339 = vsel %vm304, %v291, 0
        %v342 = vsel %vm304, %v292, 0
        %v345 = vsel %vm304, %v293, 0
        %v348 = vsel %vm304, %v294, 0
        %v351 = vsel %vm304, %v295, 0
        %353 = vmatpush.msra.mxu0 0.0
        %354 = vmatpush.msra.mxu0 0.0
        %355 = vmatpush.msra.mxu0 0.0
        %356 = vmatpush.msra.mxu0 0.0
        %357 = vmatpush.msra.mxu0 0.0
        %358 = vmatpush.msra.mxu0 0.0
        %359 = vmatpush.msra.mxu0 0.0
        %360 = vmatpush.msra.mxu0 0.0
        %v361 = vand.u32 %v303, 4294901760
        %362 = vmatpush.msra.mxu0 %v361
        %v363 = vand.u32 %v302, 4294901760
        %364 = vmatpush.msra.mxu0 %v363
        %v365 = vand.u32 %v301, 4294901760
        %366 = vmatpush.msra.mxu0 %v365
        %v367 = vand.u32 %v300, 4294901760
        %368 = vmatpush.msra.mxu0 %v367
        %v369 = vand.u32 %v299, 4294901760
        %370 = vmatpush.msra.mxu0 %v369
        %v371 = vand.u32 %v298, 4294901760
        %372 = vmatpush.msra.mxu0 %v371
        %v373 = vand.u32 %v297, 4294901760
        %374 = vmatpush.msra.mxu0 %v373
        %v375 = vand.u32 %v296, 4294901760
        %376 = vmatpush.msra.mxu0 %v375
        %v377 = vand.u32 %v306, 4294901760
        %v378 = vsub.f32 %v306, %v377
        %v379 = vand.u32 %v378, 4294901760
        %v380 = vsub.f32 %v378, %v379
        %v381 = vand.u32 %v380, 4294901760
        %382 = vmatmul.f32.gmra.mxu0 %v381
        %v383 = vpop.f32.mrf.mxu0
        %v384 = vadd.f32 0.0, %v383
        %v385 = vand.u32 %v309, 4294901760
        %v386 = vsub.f32 %v309, %v385
        %v387 = vand.u32 %v386, 4294901760
        %v388 = vsub.f32 %v386, %v387
        %v389 = vand.u32 %v388, 4294901760
        %390 = vmatmul.f32.gmra.mxu0 %v389
        %v391 = vpop.f32.mrf.mxu0
        %v392 = vadd.f32 0.0, %v391
        %v393 = vand.u32 %v312, 4294901760
        %v394 = vsub.f32 %v312, %v393
        %v395 = vand.u32 %v394, 4294901760
        %v396 = vsub.f32 %v394, %v395
        %v397 = vand.u32 %v396, 4294901760
        %398 = vmatmul.f32.gmra.mxu0 %v397
        %v399 = vpop.f32.mrf.mxu0
        %v400 = vadd.f32 0.0, %v399
        %v401 = vand.u32 %v315, 4294901760
        %v402 = vsub.f32 %v315, %v401
        %v403 = vand.u32 %v402, 4294901760
        %v404 = vsub.f32 %v402, %v403
        %v405 = vand.u32 %v404, 4294901760
        %406 = vmatmul.f32.gmra.mxu0 %v405
        %v407 = vpop.f32.mrf.mxu0
        %v408 = vadd.f32 0.0, %v407
        %v409 = vand.u32 %v318, 4294901760
        %v410 = vsub.f32 %v318, %v409
        %v411 = vand.u32 %v410, 4294901760
        %v412 = vsub.f32 %v410, %v411
        %v413 = vand.u32 %v412, 4294901760
        %414 = vmatmul.f32.gmra.mxu0 %v413
        %v415 = vpop.f32.mrf.mxu0
        %v416 = vadd.f32 0.0, %v415
        %v417 = vand.u32 %v321, 4294901760
        %v418 = vsub.f32 %v321, %v417
        %v419 = vand.u32 %v418, 4294901760
        %v420 = vsub.f32 %v418, %v419
        %v421 = vand.u32 %v420, 4294901760
        %422 = vmatmul.f32.gmra.mxu0 %v421
        %v423 = vpop.f32.mrf.mxu0
        %v424 = vadd.f32 0.0, %v423
        %v425 = vand.u32 %v324, 4294901760
        %v426 = vsub.f32 %v324, %v425
        %v427 = vand.u32 %v426, 4294901760
        %v428 = vsub.f32 %v426, %v427
        %v429 = vand.u32 %v428, 4294901760
        %430 = vmatmul.f32.gmra.mxu0 %v429
        %v431 = vpop.f32.mrf.mxu0
        %v432 = vadd.f32 0.0, %v431
        %v433 = vand.u32 %v327, 4294901760
        %v434 = vsub.f32 %v327, %v433
        %v435 = vand.u32 %v434, 4294901760
        %v436 = vsub.f32 %v434, %v435
        %v437 = vand.u32 %v436, 4294901760
        %438 = vmatmul.f32.gmra.mxu0 %v437
        %v439 = vpop.f32.mrf.mxu0
        %v440 = vadd.f32 0.0, %v439
        %v441 = vand.u32 %v330, 4294901760
        %v442 = vsub.f32 %v330, %v441
        %v443 = vand.u32 %v442, 4294901760
        %v444 = vsub.f32 %v442, %v443
        %v445 = vand.u32 %v444, 4294901760
        %446 = vmatmul.f32.gmra.mxu0 %v445
        %v447 = vpop.f32.mrf.mxu0
        %v448 = vadd.f32 0.0, %v447
        %v449 = vand.u32 %v333, 4294901760
        %v450 = vsub.f32 %v333, %v449
        %v451 = vand.u32 %v450, 4294901760
        %v452 = vsub.f32 %v450, %v451
        %v453 = vand.u32 %v452, 4294901760
        %454 = vmatmul.f32.gmra.mxu0 %v453
        %v455 = vpop.f32.mrf.mxu0
        %v456 = vadd.f32 0.0, %v455
        %v457 = vand.u32 %v336, 4294901760
        %v458 = vsub.f32 %v336, %v457
        %v459 = vand.u32 %v458, 4294901760
        %v460 = vsub.f32 %v458, %v459
        %v461 = vand.u32 %v460, 4294901760
        %462 = vmatmul.f32.gmra.mxu0 %v461
        %v463 = vpop.f32.mrf.mxu0
        %v464 = vadd.f32 0.0, %v463
        %v465 = vand.u32 %v339, 4294901760
        %v466 = vsub.f32 %v339, %v465
        %v467 = vand.u32 %v466, 4294901760
        %v468 = vsub.f32 %v466, %v467
        %v469 = vand.u32 %v468, 4294901760
        %470 = vmatmul.f32.gmra.mxu0 %v469
        %v471 = vpop.f32.mrf.mxu0
        %v472 = vadd.f32 0.0, %v471
        %v473 = vand.u32 %v342, 4294901760
        %v474 = vsub.f32 %v342, %v473
        %v475 = vand.u32 %v474, 4294901760
        %v476 = vsub.f32 %v474, %v475
        %v477 = vand.u32 %v476, 4294901760
        %478 = vmatmul.f32.gmra.mxu0 %v477
        %v479 = vpop.f32.mrf.mxu0
        %v480 = vadd.f32 0.0, %v479
        %v481 = vand.u32 %v345, 4294901760
        %v482 = vsub.f32 %v345, %v481
        %v483 = vand.u32 %v482, 4294901760
        %v484 = vsub.f32 %v482, %v483
        %v485 = vand.u32 %v484, 4294901760
        %486 = vmatmul.f32.gmra.mxu0 %v485
        %v487 = vpop.f32.mrf.mxu0
        %v488 = vadd.f32 0.0, %v487
        %v489 = vand.u32 %v348, 4294901760
        %v490 = vsub.f32 %v348, %v489
        %v491 = vand.u32 %v490, 4294901760
        %v492 = vsub.f32 %v490, %v491
        %v493 = vand.u32 %v492, 4294901760
        %494 = vmatmul.f32.gmra.mxu0 %v493
        %v495 = vpop.f32.mrf.mxu0
        %v496 = vadd.f32 0.0, %v495
        %v497 = vand.u32 %v351, 4294901760
        %v498 = vsub.f32 %v351, %v497
        %v499 = vand.u32 %v498, 4294901760
        %v500 = vsub.f32 %v498, %v499
        %v501 = vand.u32 %v500, 4294901760
        %502 = vmatmul.f32.gmra.mxu0 %v501
        %v503 = vpop.f32.mrf.mxu0
        %v504 = vadd.f32 0.0, %v503
        %505 = vdwg.mxu0
        %506 = vmatpush.msra.mxu0 0.0
        %507 = vmatpush.msra.mxu0 0.0
        %508 = vmatpush.msra.mxu0 0.0
        %509 = vmatpush.msra.mxu0 0.0
        %510 = vmatpush.msra.mxu0 0.0
        %511 = vmatpush.msra.mxu0 0.0
        %512 = vmatpush.msra.mxu0 0.0
        %513 = vmatpush.msra.mxu0 0.0
        %v514 = vand.u32 %v303, 4294901760
        %v515 = vsub.f32 %v303, %v514
        %v516 = vand.u32 %v515, 4294901760
        %v517 = vsub.f32 %v515, %v516
        %v518 = vand.u32 %v517, 4294901760
        %519 = vmatpush.msra.mxu0 %v518
        %v520 = vand.u32 %v302, 4294901760
        %v521 = vsub.f32 %v302, %v520
        %v522 = vand.u32 %v521, 4294901760
        %v523 = vsub.f32 %v521, %v522
        %v524 = vand.u32 %v523, 4294901760
        %525 = vmatpush.msra.mxu0 %v524
        %v526 = vand.u32 %v301, 4294901760
        %v527 = vsub.f32 %v301, %v526
        %v528 = vand.u32 %v527, 4294901760
        %v529 = vsub.f32 %v527, %v528
        %v530 = vand.u32 %v529, 4294901760
        %531 = vmatpush.msra.mxu0 %v530
        %v532 = vand.u32 %v300, 4294901760
        %v533 = vsub.f32 %v300, %v532
        %v534 = vand.u32 %v533, 4294901760
        %v535 = vsub.f32 %v533, %v534
        %v536 = vand.u32 %v535, 4294901760
        %537 = vmatpush.msra.mxu0 %v536
        %v538 = vand.u32 %v299, 4294901760
        %v539 = vsub.f32 %v299, %v538
        %v540 = vand.u32 %v539, 4294901760
        %v541 = vsub.f32 %v539, %v540
        %v542 = vand.u32 %v541, 4294901760
        %543 = vmatpush.msra.mxu0 %v542
        %v544 = vand.u32 %v298, 4294901760
        %v545 = vsub.f32 %v298, %v544
        %v546 = vand.u32 %v545, 4294901760
        %v547 = vsub.f32 %v545, %v546
        %v548 = vand.u32 %v547, 4294901760
        %549 = vmatpush.msra.mxu0 %v548
        %v550 = vand.u32 %v297, 4294901760
        %v551 = vsub.f32 %v297, %v550
        %v552 = vand.u32 %v551, 4294901760
        %v553 = vsub.f32 %v551, %v552
        %v554 = vand.u32 %v553, 4294901760
        %555 = vmatpush.msra.mxu0 %v554
        %v556 = vand.u32 %v296, 4294901760
        %v557 = vsub.f32 %v296, %v556
        %v558 = vand.u32 %v557, 4294901760
        %v559 = vsub.f32 %v557, %v558
        %v560 = vand.u32 %v559, 4294901760
        %561 = vmatpush.msra.mxu0 %v560
        %v562 = vand.u32 %v306, 4294901760
        %563 = vmatmul.f32.gmra.mxu0 %v562
        %v564 = vpop.f32.mrf.mxu0
        %v565 = vadd.f32 %v384, %v564
        %v566 = vand.u32 %v309, 4294901760
        %567 = vmatmul.f32.gmra.mxu0 %v566
        %v568 = vpop.f32.mrf.mxu0
        %v569 = vadd.f32 %v392, %v568
        %v570 = vand.u32 %v312, 4294901760
        %571 = vmatmul.f32.gmra.mxu0 %v570
        %v572 = vpop.f32.mrf.mxu0
        %v573 = vadd.f32 %v400, %v572
        %v574 = vand.u32 %v315, 4294901760
        %575 = vmatmul.f32.gmra.mxu0 %v574
        %v576 = vpop.f32.mrf.mxu0
        %v577 = vadd.f32 %v408, %v576
        %v578 = vand.u32 %v318, 4294901760
        %579 = vmatmul.f32.gmra.mxu0 %v578
        %v580 = vpop.f32.mrf.mxu0
        %v581 = vadd.f32 %v416, %v580
        %v582 = vand.u32 %v321, 4294901760
        %583 = vmatmul.f32.gmra.mxu0 %v582
        %v584 = vpop.f32.mrf.mxu0
        %v585 = vadd.f32 %v424, %v584
        %v586 = vand.u32 %v324, 4294901760
        %587 = vmatmul.f32.gmra.mxu0 %v586
        %v588 = vpop.f32.mrf.mxu0
        %v589 = vadd.f32 %v432, %v588
        %v590 = vand.u32 %v327, 4294901760
        %591 = vmatmul.f32.gmra.mxu0 %v590
        %v592 = vpop.f32.mrf.mxu0
        %v593 = vadd.f32 %v440, %v592
        %v594 = vand.u32 %v330, 4294901760
        %595 = vmatmul.f32.gmra.mxu0 %v594
        %v596 = vpop.f32.mrf.mxu0
        %v597 = vadd.f32 %v448, %v596
        %v598 = vand.u32 %v333, 4294901760
        %599 = vmatmul.f32.gmra.mxu0 %v598
        %v600 = vpop.f32.mrf.mxu0
        %v601 = vadd.f32 %v456, %v600
        %v602 = vand.u32 %v336, 4294901760
        %603 = vmatmul.f32.gmra.mxu0 %v602
        %v604 = vpop.f32.mrf.mxu0
        %v605 = vadd.f32 %v464, %v604
        %v606 = vand.u32 %v339, 4294901760
        %607 = vmatmul.f32.gmra.mxu0 %v606
        %v608 = vpop.f32.mrf.mxu0
        %v609 = vadd.f32 %v472, %v608
        %v610 = vand.u32 %v342, 4294901760
        %611 = vmatmul.f32.gmra.mxu0 %v610
        %v612 = vpop.f32.mrf.mxu0
        %v613 = vadd.f32 %v480, %v612
        %v614 = vand.u32 %v345, 4294901760
        %615 = vmatmul.f32.gmra.mxu0 %v614
        %v616 = vpop.f32.mrf.mxu0
        %v617 = vadd.f32 %v488, %v616
        %v618 = vand.u32 %v348, 4294901760
        %619 = vmatmul.f32.gmra.mxu0 %v618
        %v620 = vpop.f32.mrf.mxu0
        %v621 = vadd.f32 %v496, %v620
        %v622 = vand.u32 %v351, 4294901760
        %623 = vmatmul.f32.gmra.mxu0 %v622
        %v624 = vpop.f32.mrf.mxu0
        %v625 = vadd.f32 %v504, %v624
        %626 = vdwg.mxu0
        %627 = vmatpush.msra.mxu0 0.0
        %628 = vmatpush.msra.mxu0 0.0
        %629 = vmatpush.msra.mxu0 0.0
        %630 = vmatpush.msra.mxu0 0.0
        %631 = vmatpush.msra.mxu0 0.0
        %632 = vmatpush.msra.mxu0 0.0
        %633 = vmatpush.msra.mxu0 0.0
        %634 = vmatpush.msra.mxu0 0.0
        %v635 = vand.u32 %v303, 4294901760
        %v636 = vsub.f32 %v303, %v635
        %637 = vmatpush.msra.mxu0 %v636
        %v638 = vand.u32 %v302, 4294901760
        %v639 = vsub.f32 %v302, %v638
        %640 = vmatpush.msra.mxu0 %v639
        %v641 = vand.u32 %v301, 4294901760
        %v642 = vsub.f32 %v301, %v641
        %643 = vmatpush.msra.mxu0 %v642
        %v644 = vand.u32 %v300, 4294901760
        %v645 = vsub.f32 %v300, %v644
        %646 = vmatpush.msra.mxu0 %v645
        %v647 = vand.u32 %v299, 4294901760
        %v648 = vsub.f32 %v299, %v647
        %649 = vmatpush.msra.mxu0 %v648
        %v650 = vand.u32 %v298, 4294901760
        %v651 = vsub.f32 %v298, %v650
        %652 = vmatpush.msra.mxu0 %v651
        %v653 = vand.u32 %v297, 4294901760
        %v654 = vsub.f32 %v297, %v653
        %655 = vmatpush.msra.mxu0 %v654
        %v656 = vand.u32 %v296, 4294901760
        %v657 = vsub.f32 %v296, %v656
        %658 = vmatpush.msra.mxu0 %v657
        %v659 = vand.u32 %v306, 4294901760
        %v660 = vsub.f32 %v306, %v659
        %661 = vmatmul.f32.gmra.mxu0 %v660
        %v662 = vpop.f32.mrf.mxu0
        %v663 = vadd.f32 %v565, %v662
        %v664 = vand.u32 %v309, 4294901760
        %v665 = vsub.f32 %v309, %v664
        %666 = vmatmul.f32.gmra.mxu0 %v665
        %v667 = vpop.f32.mrf.mxu0
        %v668 = vadd.f32 %v569, %v667
        %v669 = vand.u32 %v312, 4294901760
        %v670 = vsub.f32 %v312, %v669
        %671 = vmatmul.f32.gmra.mxu0 %v670
        %v672 = vpop.f32.mrf.mxu0
        %v673 = vadd.f32 %v573, %v672
        %v674 = vand.u32 %v315, 4294901760
        %v675 = vsub.f32 %v315, %v674
        %676 = vmatmul.f32.gmra.mxu0 %v675
        %v677 = vpop.f32.mrf.mxu0
        %v678 = vadd.f32 %v577, %v677
        %v679 = vand.u32 %v318, 4294901760
        %v680 = vsub.f32 %v318, %v679
        %681 = vmatmul.f32.gmra.mxu0 %v680
        %v682 = vpop.f32.mrf.mxu0
        %v683 = vadd.f32 %v581, %v682
        %v684 = vand.u32 %v321, 4294901760
        %v685 = vsub.f32 %v321, %v684
        %686 = vmatmul.f32.gmra.mxu0 %v685
        %v687 = vpop.f32.mrf.mxu0
        %v688 = vadd.f32 %v585, %v687
        %v689 = vand.u32 %v324, 4294901760
        %v690 = vsub.f32 %v324, %v689
        %691 = vmatmul.f32.gmra.mxu0 %v690
        %v692 = vpop.f32.mrf.mxu0
        %v693 = vadd.f32 %v589, %v692
        %v694 = vand.u32 %v327, 4294901760
        %v695 = vsub.f32 %v327, %v694
        %696 = vmatmul.f32.gmra.mxu0 %v695
        %v697 = vpop.f32.mrf.mxu0
        %v698 = vadd.f32 %v593, %v697
        %v699 = vand.u32 %v330, 4294901760
        %v700 = vsub.f32 %v330, %v699
        %701 = vmatmul.f32.gmra.mxu0 %v700
        %v702 = vpop.f32.mrf.mxu0
        %v703 = vadd.f32 %v597, %v702
        %v704 = vand.u32 %v333, 4294901760
        %v705 = vsub.f32 %v333, %v704
        %706 = vmatmul.f32.gmra.mxu0 %v705
        %v707 = vpop.f32.mrf.mxu0
        %v708 = vadd.f32 %v601, %v707
        %v709 = vand.u32 %v336, 4294901760
        %v710 = vsub.f32 %v336, %v709
        %711 = vmatmul.f32.gmra.mxu0 %v710
        %v712 = vpop.f32.mrf.mxu0
        %v713 = vadd.f32 %v605, %v712
        %v714 = vand.u32 %v339, 4294901760
        %v715 = vsub.f32 %v339, %v714
        %716 = vmatmul.f32.gmra.mxu0 %v715
        %v717 = vpop.f32.mrf.mxu0
        %v718 = vadd.f32 %v609, %v717
        %v719 = vand.u32 %v342, 4294901760
        %v720 = vsub.f32 %v342, %v719
        %721 = vmatmul.f32.gmra.mxu0 %v720
        %v722 = vpop.f32.mrf.mxu0
        %v723 = vadd.f32 %v613, %v722
        %v724 = vand.u32 %v345, 4294901760
        %v725 = vsub.f32 %v345, %v724
        %726 = vmatmul.f32.gmra.mxu0 %v725
        %v727 = vpop.f32.mrf.mxu0
        %v728 = vadd.f32 %v617, %v727
        %v729 = vand.u32 %v348, 4294901760
        %v730 = vsub.f32 %v348, %v729
        %731 = vmatmul.f32.gmra.mxu0 %v730
        %v732 = vpop.f32.mrf.mxu0
        %v733 = vadd.f32 %v621, %v732
        %v734 = vand.u32 %v351, 4294901760
        %v735 = vsub.f32 %v351, %v734
        %736 = vmatmul.f32.gmra.mxu0 %v735
        %v737 = vpop.f32.mrf.mxu0
        %v738 = vadd.f32 %v625, %v737
        %739 = vdwg.mxu0
        %740 = vmatpush.msra.mxu0 0.0
        %741 = vmatpush.msra.mxu0 0.0
        %742 = vmatpush.msra.mxu0 0.0
        %743 = vmatpush.msra.mxu0 0.0
        %744 = vmatpush.msra.mxu0 0.0
        %745 = vmatpush.msra.mxu0 0.0
        %746 = vmatpush.msra.mxu0 0.0
        %747 = vmatpush.msra.mxu0 0.0
        %v748 = vand.u32 %v303, 4294901760
        %749 = vmatpush.msra.mxu0 %v748
        %v750 = vand.u32 %v302, 4294901760
        %751 = vmatpush.msra.mxu0 %v750
        %v752 = vand.u32 %v301, 4294901760
        %753 = vmatpush.msra.mxu0 %v752
        %v754 = vand.u32 %v300, 4294901760
        %755 = vmatpush.msra.mxu0 %v754
        %v756 = vand.u32 %v299, 4294901760
        %757 = vmatpush.msra.mxu0 %v756
        %v758 = vand.u32 %v298, 4294901760
        %759 = vmatpush.msra.mxu0 %v758
        %v760 = vand.u32 %v297, 4294901760
        %761 = vmatpush.msra.mxu0 %v760
        %v762 = vand.u32 %v296, 4294901760
        %763 = vmatpush.msra.mxu0 %v762
        %v764 = vand.u32 %v306, 4294901760
        %v765 = vsub.f32 %v306, %v764
        %v766 = vand.u32 %v765, 4294901760
        %767 = vmatmul.f32.gmra.mxu0 %v766
        %v768 = vpop.f32.mrf.mxu0
        %v769 = vadd.f32 %v663, %v768
        %v770 = vand.u32 %v309, 4294901760
        %v771 = vsub.f32 %v309, %v770
        %v772 = vand.u32 %v771, 4294901760
        %773 = vmatmul.f32.gmra.mxu0 %v772
        %v774 = vpop.f32.mrf.mxu0
        %v775 = vadd.f32 %v668, %v774
        %v776 = vand.u32 %v312, 4294901760
        %v777 = vsub.f32 %v312, %v776
        %v778 = vand.u32 %v777, 4294901760
        %779 = vmatmul.f32.gmra.mxu0 %v778
        %v780 = vpop.f32.mrf.mxu0
        %v781 = vadd.f32 %v673, %v780
        %v782 = vand.u32 %v315, 4294901760
        %v783 = vsub.f32 %v315, %v782
        %v784 = vand.u32 %v783, 4294901760
        %785 = vmatmul.f32.gmra.mxu0 %v784
        %v786 = vpop.f32.mrf.mxu0
        %v787 = vadd.f32 %v678, %v786
        %v788 = vand.u32 %v318, 4294901760
        %v789 = vsub.f32 %v318, %v788
        %v790 = vand.u32 %v789, 4294901760
        %791 = vmatmul.f32.gmra.mxu0 %v790
        %v792 = vpop.f32.mrf.mxu0
        %v793 = vadd.f32 %v683, %v792
        %v794 = vand.u32 %v321, 4294901760
        %v795 = vsub.f32 %v321, %v794
        %v796 = vand.u32 %v795, 4294901760
        %797 = vmatmul.f32.gmra.mxu0 %v796
        %v798 = vpop.f32.mrf.mxu0
        %v799 = vadd.f32 %v688, %v798
        %v800 = vand.u32 %v324, 4294901760
        %v801 = vsub.f32 %v324, %v800
        %v802 = vand.u32 %v801, 4294901760
        %803 = vmatmul.f32.gmra.mxu0 %v802
        %v804 = vpop.f32.mrf.mxu0
        %v805 = vadd.f32 %v693, %v804
        %v806 = vand.u32 %v327, 4294901760
        %v807 = vsub.f32 %v327, %v806
        %v808 = vand.u32 %v807, 4294901760
        %809 = vmatmul.f32.gmra.mxu0 %v808
        %v810 = vpop.f32.mrf.mxu0
        %v811 = vadd.f32 %v698, %v810
        %v812 = vand.u32 %v330, 4294901760
        %v813 = vsub.f32 %v330, %v812
        %v814 = vand.u32 %v813, 4294901760
        %815 = vmatmul.f32.gmra.mxu0 %v814
        %v816 = vpop.f32.mrf.mxu0
        %v817 = vadd.f32 %v703, %v816
        %v818 = vand.u32 %v333, 4294901760
        %v819 = vsub.f32 %v333, %v818
        %v820 = vand.u32 %v819, 4294901760
        %821 = vmatmul.f32.gmra.mxu0 %v820
        %v822 = vpop.f32.mrf.mxu0
        %v823 = vadd.f32 %v708, %v822
        %v824 = vand.u32 %v336, 4294901760
        %v825 = vsub.f32 %v336, %v824
        %v826 = vand.u32 %v825, 4294901760
        %827 = vmatmul.f32.gmra.mxu0 %v826
        %v828 = vpop.f32.mrf.mxu0
        %v829 = vadd.f32 %v713, %v828
        %v830 = vand.u32 %v339, 4294901760
        %v831 = vsub.f32 %v339, %v830
        %v832 = vand.u32 %v831, 4294901760
        %833 = vmatmul.f32.gmra.mxu0 %v832
        %v834 = vpop.f32.mrf.mxu0
        %v835 = vadd.f32 %v718, %v834
        %v836 = vand.u32 %v342, 4294901760
        %v837 = vsub.f32 %v342, %v836
        %v838 = vand.u32 %v837, 4294901760
        %839 = vmatmul.f32.gmra.mxu0 %v838
        %v840 = vpop.f32.mrf.mxu0
        %v841 = vadd.f32 %v723, %v840
        %v842 = vand.u32 %v345, 4294901760
        %v843 = vsub.f32 %v345, %v842
        %v844 = vand.u32 %v843, 4294901760
        %845 = vmatmul.f32.gmra.mxu0 %v844
        %v846 = vpop.f32.mrf.mxu0
        %v847 = vadd.f32 %v728, %v846
        %v848 = vand.u32 %v348, 4294901760
        %v849 = vsub.f32 %v348, %v848
        %v850 = vand.u32 %v849, 4294901760
        %851 = vmatmul.f32.gmra.mxu0 %v850
        %v852 = vpop.f32.mrf.mxu0
        %v853 = vadd.f32 %v733, %v852
        %v854 = vand.u32 %v351, 4294901760
        %v855 = vsub.f32 %v351, %v854
        %v856 = vand.u32 %v855, 4294901760
        %857 = vmatmul.f32.gmra.mxu0 %v856
        %v858 = vpop.f32.mrf.mxu0
        %v859 = vadd.f32 %v738, %v858
        %860 = vdwg.mxu0
        %861 = vmatpush.msra.mxu0 0.0
        %862 = vmatpush.msra.mxu0 0.0
        %863 = vmatpush.msra.mxu0 0.0
        %864 = vmatpush.msra.mxu0 0.0
        %865 = vmatpush.msra.mxu0 0.0
        %866 = vmatpush.msra.mxu0 0.0
        %867 = vmatpush.msra.mxu0 0.0
        %868 = vmatpush.msra.mxu0 0.0
        %v869 = vand.u32 %v303, 4294901760
        %v870 = vsub.f32 %v303, %v869
        %v871 = vand.u32 %v870, 4294901760
        %872 = vmatpush.msra.mxu0 %v871
        %v873 = vand.u32 %v302, 4294901760
        %v874 = vsub.f32 %v302, %v873
        %v875 = vand.u32 %v874, 4294901760
        %876 = vmatpush.msra.mxu0 %v875
        %v877 = vand.u32 %v301, 4294901760
        %v878 = vsub.f32 %v301, %v877
        %v879 = vand.u32 %v878, 4294901760
        %880 = vmatpush.msra.mxu0 %v879
        %v881 = vand.u32 %v300, 4294901760
        %v882 = vsub.f32 %v300, %v881
        %v883 = vand.u32 %v882, 4294901760
        %884 = vmatpush.msra.mxu0 %v883
        %v885 = vand.u32 %v299, 4294901760
        %v886 = vsub.f32 %v299, %v885
        %v887 = vand.u32 %v886, 4294901760
        %888 = vmatpush.msra.mxu0 %v887
        %v889 = vand.u32 %v298, 4294901760
        %v890 = vsub.f32 %v298, %v889
        %v891 = vand.u32 %v890, 4294901760
        %892 = vmatpush.msra.mxu0 %v891
        %v893 = vand.u32 %v297, 4294901760
        %v894 = vsub.f32 %v297, %v893
        %v895 = vand.u32 %v894, 4294901760
        %896 = vmatpush.msra.mxu0 %v895
        %v897 = vand.u32 %v296, 4294901760
        %v898 = vsub.f32 %v296, %v897
        %v899 = vand.u32 %v898, 4294901760
        %900 = vmatpush.msra.mxu0 %v899
        %v901 = vand.u32 %v306, 4294901760
        %902 = vmatmul.f32.gmra.mxu0 %v901
        %v903 = vpop.f32.mrf.mxu0
        %v904 = vadd.f32 %v769, %v903
        %v905 = vand.u32 %v309, 4294901760
        %906 = vmatmul.f32.gmra.mxu0 %v905
        %v907 = vpop.f32.mrf.mxu0
        %v908 = vadd.f32 %v775, %v907
        %v909 = vand.u32 %v312, 4294901760
        %910 = vmatmul.f32.gmra.mxu0 %v909
        %v911 = vpop.f32.mrf.mxu0
        %v912 = vadd.f32 %v781, %v911
        %v913 = vand.u32 %v315, 4294901760
        %914 = vmatmul.f32.gmra.mxu0 %v913
        %v915 = vpop.f32.mrf.mxu0
        %v916 = vadd.f32 %v787, %v915
        %v917 = vand.u32 %v318, 4294901760
        %918 = vmatmul.f32.gmra.mxu0 %v917
        %v919 = vpop.f32.mrf.mxu0
        %v920 = vadd.f32 %v793, %v919
        %v921 = vand.u32 %v321, 4294901760
        %922 = vmatmul.f32.gmra.mxu0 %v921
        %v923 = vpop.f32.mrf.mxu0
        %v924 = vadd.f32 %v799, %v923
        %v925 = vand.u32 %v324, 4294901760
        %926 = vmatmul.f32.gmra.mxu0 %v925
        %v927 = vpop.f32.mrf.mxu0
        %v928 = vadd.f32 %v805, %v927
        %v929 = vand.u32 %v327, 4294901760
        %930 = vmatmul.f32.gmra.mxu0 %v929
        %v931 = vpop.f32.mrf.mxu0
        %v932 = vadd.f32 %v811, %v931
        %v933 = vand.u32 %v330, 4294901760
        %934 = vmatmul.f32.gmra.mxu0 %v933
        %v935 = vpop.f32.mrf.mxu0
        %v936 = vadd.f32 %v817, %v935
        %v937 = vand.u32 %v333, 4294901760
        %938 = vmatmul.f32.gmra.mxu0 %v937
        %v939 = vpop.f32.mrf.mxu0
        %v940 = vadd.f32 %v823, %v939
        %v941 = vand.u32 %v336, 4294901760
        %942 = vmatmul.f32.gmra.mxu0 %v941
        %v943 = vpop.f32.mrf.mxu0
        %v944 = vadd.f32 %v829, %v943
        %v945 = vand.u32 %v339, 4294901760
        %946 = vmatmul.f32.gmra.mxu0 %v945
        %v947 = vpop.f32.mrf.mxu0
        %v948 = vadd.f32 %v835, %v947
        %v949 = vand.u32 %v342, 4294901760
        %950 = vmatmul.f32.gmra.mxu0 %v949
        %v951 = vpop.f32.mrf.mxu0
        %v952 = vadd.f32 %v841, %v951
        %v953 = vand.u32 %v345, 4294901760
        %954 = vmatmul.f32.gmra.mxu0 %v953
        %v955 = vpop.f32.mrf.mxu0
        %v956 = vadd.f32 %v847, %v955
        %v957 = vand.u32 %v348, 4294901760
        %958 = vmatmul.f32.gmra.mxu0 %v957
        %v959 = vpop.f32.mrf.mxu0
        %v960 = vadd.f32 %v853, %v959
        %v961 = vand.u32 %v351, 4294901760
        %962 = vmatmul.f32.gmra.mxu0 %v961
        %v963 = vpop.f32.mrf.mxu0
        %v964 = vadd.f32 %v859, %v963
        %965 = vdwg.mxu0
        %966 = vmatpush.msra.mxu0 0.0
        %967 = vmatpush.msra.mxu0 0.0
        %968 = vmatpush.msra.mxu0 0.0
        %969 = vmatpush.msra.mxu0 0.0
        %970 = vmatpush.msra.mxu0 0.0
        %971 = vmatpush.msra.mxu0 0.0
        %972 = vmatpush.msra.mxu0 0.0
        %973 = vmatpush.msra.mxu0 0.0
        %v974 = vand.u32 %v303, 4294901760
        %975 = vmatpush.msra.mxu0 %v974
        %v976 = vand.u32 %v302, 4294901760
        %977 = vmatpush.msra.mxu0 %v976
        %v978 = vand.u32 %v301, 4294901760
        %979 = vmatpush.msra.mxu0 %v978
        %v980 = vand.u32 %v300, 4294901760
        %981 = vmatpush.msra.mxu0 %v980
        %v982 = vand.u32 %v299, 4294901760
        %983 = vmatpush.msra.mxu0 %v982
        %v984 = vand.u32 %v298, 4294901760
        %985 = vmatpush.msra.mxu0 %v984
        %v986 = vand.u32 %v297, 4294901760
        %987 = vmatpush.msra.mxu0 %v986
        %v988 = vand.u32 %v296, 4294901760
        %989 = vmatpush.msra.mxu0 %v988
        %v990 = vand.u32 %v306, 4294901760
        %991 = vmatmul.f32.gmra.mxu0 %v990
        %v992 = vpop.f32.mrf.mxu0
        %v993 = vadd.f32 %v904, %v992
        %v994 = vand.u32 %v309, 4294901760
        %995 = vmatmul.f32.gmra.mxu0 %v994
        %v996 = vpop.f32.mrf.mxu0
        %v997 = vadd.f32 %v908, %v996
        %v998 = vand.u32 %v312, 4294901760
        %999 = vmatmul.f32.gmra.mxu0 %v998
        %v1000 = vpop.f32.mrf.mxu0
        %v1001 = vadd.f32 %v912, %v1000
        %v1002 = vand.u32 %v315, 4294901760
        %1003 = vmatmul.f32.gmra.mxu0 %v1002
        %v1004 = vpop.f32.mrf.mxu0
        %v1005 = vadd.f32 %v916, %v1004
        %v1006 = vand.u32 %v318, 4294901760
        %1007 = vmatmul.f32.gmra.mxu0 %v1006
        %v1008 = vpop.f32.mrf.mxu0
        %v1009 = vadd.f32 %v920, %v1008
        %v1010 = vand.u32 %v321, 4294901760
        %1011 = vmatmul.f32.gmra.mxu0 %v1010
        %v1012 = vpop.f32.mrf.mxu0
        %v1013 = vadd.f32 %v924, %v1012
        %v1014 = vand.u32 %v324, 4294901760
        %1015 = vmatmul.f32.gmra.mxu0 %v1014
        %v1016 = vpop.f32.mrf.mxu0
        %v1017 = vadd.f32 %v928, %v1016
        %v1018 = vand.u32 %v327, 4294901760
        %1019 = vmatmul.f32.gmra.mxu0 %v1018
        %v1020 = vpop.f32.mrf.mxu0
        %v1021 = vadd.f32 %v932, %v1020
        %v1022 = vand.u32 %v330, 4294901760
        %1023 = vmatmul.f32.gmra.mxu0 %v1022
        %v1024 = vpop.f32.mrf.mxu0
        %v1025 = vadd.f32 %v936, %v1024
        %v1026 = vand.u32 %v333, 4294901760
        %1027 = vmatmul.f32.gmra.mxu0 %v1026
        %v1028 = vpop.f32.mrf.mxu0
        %v1029 = vadd.f32 %v940, %v1028
        %v1030 = vand.u32 %v336, 4294901760
        %1031 = vmatmul.f32.gmra.mxu0 %v1030
        %v1032 = vpop.f32.mrf.mxu0
        %v1033 = vadd.f32 %v944, %v1032
        %v1034 = vand.u32 %v339, 4294901760
        %1035 = vmatmul.f32.gmra.mxu0 %v1034
        %v1036 = vpop.f32.mrf.mxu0
        %v1037 = vadd.f32 %v948, %v1036
        %v1038 = vand.u32 %v342, 4294901760
        %1039 = vmatmul.f32.gmra.mxu0 %v1038
        %v1040 = vpop.f32.mrf.mxu0
        %v1041 = vadd.f32 %v952, %v1040
        %v1042 = vand.u32 %v345, 4294901760
        %1043 = vmatmul.f32.gmra.mxu0 %v1042
        %v1044 = vpop.f32.mrf.mxu0
        %v1045 = vadd.f32 %v956, %v1044
        %v1046 = vand.u32 %v348, 4294901760
        %1047 = vmatmul.f32.gmra.mxu0 %v1046
        %v1048 = vpop.f32.mrf.mxu0
        %v1049 = vadd.f32 %v960, %v1048
        %v1050 = vand.u32 %v351, 4294901760
        %1051 = vmatmul.f32.gmra.mxu0 %v1050
        %v1052 = vpop.f32.mrf.mxu0
        %v1053 = vadd.f32 %v964, %v1052
        %1054 = vdwg.mxu0
        %v1055 = vld [vmem:[%s2] sm:$0x1]
        %v1057 = vperm.slane %v1055, 0
        %v1059 = vmul.f32 %v993, %v1057
        %v1060 = vmul.f32 %v997, %v1057
        %v1061 = vmul.f32 %v1001, %v1057
        %v1062 = vmul.f32 %v1005, %v1057
        %v1063 = vmul.f32 %v1009, %v1057
        %v1064 = vmul.f32 %v1013, %v1057
        %v1065 = vmul.f32 %v1017, %v1057
        %v1066 = vmul.f32 %v1021, %v1057
        %v1067 = vmul.f32 %v1025, %v1057
        %v1068 = vmul.f32 %v1029, %v1057
        %v1069 = vmul.f32 %v1033, %v1057
        %v1070 = vmul.f32 %v1037, %v1057
        %v1071 = vmul.f32 %v1041, %v1057
        %v1072 = vmul.f32 %v1045, %v1057
        %v1073 = vmul.f32 %v1049, %v1057
        %v1074 = vmul.f32 %v1053, %v1057
        %1075 = vadd.xlane.f32.xlu0 %v1059
        %v1076 = vpop.xlane.xlu0 %1075
        %1077 = vadd.xlane.f32.xlu0 %v1060
        %v1078 = vpop.xlane.xlu0 %1077
        %1079 = vadd.xlane.f32.xlu0 %v1061
        %v1080 = vpop.xlane.xlu0 %1079
        %1081 = vadd.xlane.f32.xlu0 %v1062
        %v1082 = vpop.xlane.xlu0 %1081
        %1083 = vadd.xlane.f32.xlu0 %v1063
        %v1084 = vpop.xlane.xlu0 %1083
        %1085 = vadd.xlane.f32.xlu0 %v1064
        %v1086 = vpop.xlane.xlu0 %1085
        %1087 = vadd.xlane.f32.xlu0 %v1065
        %v1088 = vpop.xlane.xlu0 %1087
        %1089 = vadd.xlane.f32.xlu0 %v1066
        %v1090 = vpop.xlane.xlu0 %1089
        %1091 = vadd.xlane.f32.xlu0 %v1067
        %v1092 = vpop.xlane.xlu0 %1091
        %1093 = vadd.xlane.f32.xlu0 %v1068
        %v1094 = vpop.xlane.xlu0 %1093
        %1095 = vadd.xlane.f32.xlu0 %v1069
        %v1096 = vpop.xlane.xlu0 %1095
        %1097 = vadd.xlane.f32.xlu0 %v1070
        %v1098 = vpop.xlane.xlu0 %1097
        %1099 = vadd.xlane.f32.xlu0 %v1071
        %v1100 = vpop.xlane.xlu0 %1099
        %1101 = vadd.xlane.f32.xlu0 %v1072
        %v1102 = vpop.xlane.xlu0 %1101
        %1103 = vadd.xlane.f32.xlu0 %v1073
        %v1104 = vpop.xlane.xlu0 %1103
        %1105 = vadd.xlane.f32.xlu0 %v1074
        %v1106 = vpop.xlane.xlu0 %1105
        %vm1107 = vcmask 7168
        %1108 = vst.msk [vmem:[%s272] sm:$0xff] %vm1107, %v1076
        %1109 = vst.msk [vmem:[%s272 + $0x8] sm:$0xff] %vm1107, %v1078
        %1110 = vst.msk [vmem:[%s272 + $0x10] sm:$0xff] %vm1107, %v1080
        %1111 = vst.msk [vmem:[%s272 + $0x18] sm:$0xff] %vm1107, %v1082
        %1112 = vst.msk [vmem:[%s272 + $0x20] sm:$0xff] %vm1107, %v1084
        %1113 = vst.msk [vmem:[%s272 + $0x28] sm:$0xff] %vm1107, %v1086
        %1114 = vst.msk [vmem:[%s272 + $0x30] sm:$0xff] %vm1107, %v1088
        %1115 = vst.msk [vmem:[%s272 + $0x38] sm:$0xff] %vm1107, %v1090
        %1116 = vst.msk [vmem:[%s272 + $0x40] sm:$0xff] %vm1107, %v1092
        %1117 = vst.msk [vmem:[%s272 + $0x48] sm:$0xff] %vm1107, %v1094
        %1118 = vst.msk [vmem:[%s272 + $0x50] sm:$0xff] %vm1107, %v1096
        %1119 = vst.msk [vmem:[%s272 + $0x58] sm:$0xff] %vm1107, %v1098
        %1120 = vst.msk [vmem:[%s272 + $0x60] sm:$0xff] %vm1107, %v1100
        %1121 = vst.msk [vmem:[%s272 + $0x68] sm:$0xff] %vm1107, %v1102
        %1122 = vst.msk [vmem:[%s272 + $0x70] sm:$0xff] %vm1107, %v1104
        %1123 = vst.msk [vmem:[%s272 + $0x78] sm:$0xff] %vm1107, %v1106
        %v1124 = vld [vmem:[%s3] sm:$0x1]
        %v1126 = vperm.slane %v1124, 0
        %v1128 = vmul.f32 %v993, %v1126
        %v1129 = vmul.f32 %v997, %v1126
        %v1130 = vmul.f32 %v1001, %v1126
        %v1131 = vmul.f32 %v1005, %v1126
        %v1132 = vmul.f32 %v1009, %v1126
        %v1133 = vmul.f32 %v1013, %v1126
        %v1134 = vmul.f32 %v1017, %v1126
        %v1135 = vmul.f32 %v1021, %v1126
        %v1136 = vmul.f32 %v1025, %v1126
        %v1137 = vmul.f32 %v1029, %v1126
        %v1138 = vmul.f32 %v1033, %v1126
        %v1139 = vmul.f32 %v1037, %v1126
        %v1140 = vmul.f32 %v1041, %v1126
        %v1141 = vmul.f32 %v1045, %v1126
        %v1142 = vmul.f32 %v1049, %v1126
        %v1143 = vmul.f32 %v1053, %v1126
        %1144 = vadd.xlane.f32.xlu0 %v1128
        %v1145 = vpop.xlane.xlu0 %1144
        %1146 = vadd.xlane.f32.xlu0 %v1129
        %v1147 = vpop.xlane.xlu0 %1146
        %1148 = vadd.xlane.f32.xlu0 %v1130
        %v1149 = vpop.xlane.xlu0 %1148
        %1150 = vadd.xlane.f32.xlu0 %v1131
        %v1151 = vpop.xlane.xlu0 %1150
        %1152 = vadd.xlane.f32.xlu0 %v1132
        %v1153 = vpop.xlane.xlu0 %1152
        %1154 = vadd.xlane.f32.xlu0 %v1133
        %v1155 = vpop.xlane.xlu0 %1154
        %1156 = vadd.xlane.f32.xlu0 %v1134
        %v1157 = vpop.xlane.xlu0 %1156
        %1158 = vadd.xlane.f32.xlu0 %v1135
        %v1159 = vpop.xlane.xlu0 %1158
        %1160 = vadd.xlane.f32.xlu0 %v1136
        %v1161 = vpop.xlane.xlu0 %1160
        %1162 = vadd.xlane.f32.xlu0 %v1137
        %v1163 = vpop.xlane.xlu0 %1162
        %1164 = vadd.xlane.f32.xlu0 %v1138
        %v1165 = vpop.xlane.xlu0 %1164
        %1166 = vadd.xlane.f32.xlu0 %v1139
        %v1167 = vpop.xlane.xlu0 %1166
        %1168 = vadd.xlane.f32.xlu0 %v1140
        %v1169 = vpop.xlane.xlu0 %1168
        %1170 = vadd.xlane.f32.xlu0 %v1141
        %v1171 = vpop.xlane.xlu0 %1170
        %1172 = vadd.xlane.f32.xlu0 %v1142
        %v1173 = vpop.xlane.xlu0 %1172
        %1174 = vadd.xlane.f32.xlu0 %v1143
        %v1175 = vpop.xlane.xlu0 %1174
        %1176 = vst.msk [vmem:[%s278] sm:$0xff] %vm1107, %v1145
        %1177 = vst.msk [vmem:[%s278 + $0x8] sm:$0xff] %vm1107, %v1147
        %1178 = vst.msk [vmem:[%s278 + $0x10] sm:$0xff] %vm1107, %v1149
        %1179 = vst.msk [vmem:[%s278 + $0x18] sm:$0xff] %vm1107, %v1151
        %1180 = vst.msk [vmem:[%s278 + $0x20] sm:$0xff] %vm1107, %v1153
        %1181 = vst.msk [vmem:[%s278 + $0x28] sm:$0xff] %vm1107, %v1155
        %1182 = vst.msk [vmem:[%s278 + $0x30] sm:$0xff] %vm1107, %v1157
        %1183 = vst.msk [vmem:[%s278 + $0x38] sm:$0xff] %vm1107, %v1159
        %1184 = vst.msk [vmem:[%s278 + $0x40] sm:$0xff] %vm1107, %v1161
        %1185 = vst.msk [vmem:[%s278 + $0x48] sm:$0xff] %vm1107, %v1163
        %1186 = vst.msk [vmem:[%s278 + $0x50] sm:$0xff] %vm1107, %v1165
        %1187 = vst.msk [vmem:[%s278 + $0x58] sm:$0xff] %vm1107, %v1167
        %1188 = vst.msk [vmem:[%s278 + $0x60] sm:$0xff] %vm1107, %v1169
        %1189 = vst.msk [vmem:[%s278 + $0x68] sm:$0xff] %vm1107, %v1171
        %1190 = vst.msk [vmem:[%s278 + $0x70] sm:$0xff] %vm1107, %v1173
        %1191 = vst.msk [vmem:[%s278 + $0x78] sm:$0xff] %vm1107, %v1175
        %v1192 = vpack.c.bf16 %v993, %v993
        %v1193 = vpack.c.bf16 %v997, %v997
        %v1194 = vpack.c.bf16 %v1001, %v1001
        %v1195 = vpack.c.bf16 %v1005, %v1005
        %v1196 = vpack.c.bf16 %v1009, %v1009
        %v1197 = vpack.c.bf16 %v1013, %v1013
        %v1198 = vpack.c.bf16 %v1017, %v1017
        %v1199 = vpack.c.bf16 %v1021, %v1021
        %v1200 = vpack.c.bf16 %v1025, %v1025
        %v1201 = vpack.c.bf16 %v1029, %v1029
        %v1202 = vpack.c.bf16 %v1033, %v1033
        %v1203 = vpack.c.bf16 %v1037, %v1037
        %v1204 = vpack.c.bf16 %v1041, %v1041
        %v1205 = vpack.c.bf16 %v1045, %v1045
        %v1206 = vpack.c.bf16 %v1049, %v1049
        %v1207 = vpack.c.bf16 %v1053, %v1053
        %1208 = vst [vmem:[%s246] sm:$0xf] %v1192
        %1209 = vst [vmem:[%s246 + $0x4] sm:$0xf] %v1193
        %1210 = vst [vmem:[%s246 + $0x8] sm:$0xf] %v1194
        %1211 = vst [vmem:[%s246 + $0xc] sm:$0xf] %v1195
        %1212 = vst [vmem:[%s246 + $0x10] sm:$0xf] %v1196
        %1213 = vst [vmem:[%s246 + $0x14] sm:$0xf] %v1197
        %1214 = vst [vmem:[%s246 + $0x18] sm:$0xf] %v1198
        %1215 = vst [vmem:[%s246 + $0x1c] sm:$0xf] %v1199
        %1216 = vst [vmem:[%s246 + $0x20] sm:$0xf] %v1200
        %1217 = vst [vmem:[%s246 + $0x24] sm:$0xf] %v1201
        %1218 = vst [vmem:[%s246 + $0x28] sm:$0xf] %v1202
        %1219 = vst [vmem:[%s246 + $0x2c] sm:$0xf] %v1203
        %1220 = vst [vmem:[%s246 + $0x30] sm:$0xf] %v1204
        %1221 = vst [vmem:[%s246 + $0x34] sm:$0xf] %v1205
        %1222 = vst [vmem:[%s246 + $0x38] sm:$0xf] %v1206
        %1223 = vst [vmem:[%s246 + $0x3c] sm:$0xf] %v1207
        %s1224 = sand.u32 %s118, 1
        %s1225 = scalar_lea.sflag [#allocation3], %s1224
        %s1226 = sand.u32 %s118, 1
        %s1227 = smul.addr %s1226, 64
        %s1228 = scalar_lea.vmem [#allocation2], %s1227
        %s1229 = smul.u32 16, %s21
        %p1230 = scmp.lt.s32.totalorder %s1229, 31
        %s1231 = scalar_select %p1230, %s1229, 31
        %s1232 = smul.addr %s1231, 8
        %s1233 = scalar_lea.vmem %s5, %s1232
        %s1234 = smul.u32 16, %s21
        %p1235 = scmp.lt.s32.totalorder %s1234, 31
        %s1236 = scalar_select %p1235, %s1234, 31
        %s1237 = smul.addr %s1236, 8
        %s1238 = scalar_lea.vmem %s6, %s1237
        // Predicated region
        $region37: #{tpu_custom_call.1} parent=35 // pred_check
          %p1239 = pneg %p128
        $region38: #{tpu_custom_call.1} parent=35 // pred_check_branch
          %1241 = sbr.rel (%p1239) target = $region40
        $region39: #{tpu_custom_call.1} parent=35 // pred_region
          %s1242 = smul.u32 16, %s21
          %1244 = vsyncadd %s1225, 0
          %s1245 = smul.addr %s1242, 4
          %s1246 = scalar_lea.hbm %s4, %s1245
          %s1247 = sshll.u32 %s1228, 4
          %s1248 = int_to_ptr.vmem [resolvable:$true] %s1247
          %s1249 = sshll.u32 %s1246, 4
          %s1250 = int_to_ptr.hbm [resolvable:$true] %s1249
          %1255 = dma.vmem_to_hbm [thread:$0]  %s1248, 1024, %s1250, %s1225, 64, 64, 4
        $region40: #{tpu_custom_call.1} parent=35 // pred_fallthru
          _
        // Predicated region
        $region41: #{tpu_custom_call.1} parent=35 // pred_check
          %p1256 = pneg %p154
        $region42: #{tpu_custom_call.1} parent=35 // pred_check_branch
          %1258 = sbr.rel (%p1256) target = $region44
        $region43: #{tpu_custom_call.1} parent=35 // pred_region
          %s1259 = smul.u32 16, %s21
        $region44: #{tpu_custom_call.1} parent=35 // pred_fallthru
          _
        // Predicated region
        $region45: #{tpu_custom_call.1} parent=35 // pred_check
          %p1260 = pneg %p180
        $region46: #{tpu_custom_call.1} parent=35 // pred_check_branch
          %1262 = sbr.rel (%p1260) target = $region48
        $region47: #{tpu_custom_call.1} parent=35 // pred_region
          %s1263 = smul.u32 16, %s21
        $region48: #{tpu_custom_call.1} parent=35 // pred_fallthru
          _
      $region36: #{tpu_custom_call.1} parent=5 // pred_fallthru
        _
      %p1264 = scmp.le.s32.totalorder 2, %s16
      // Predicated region
      $region49: #{tpu_custom_call.1} parent=5 // pred_check
        %p1265 = pneg %p1264
      $region50: #{tpu_custom_call.1} parent=5 // pred_check_branch
        %1267 = sbr.rel (%p1265) target = $region52
      $region51: #{tpu_custom_call.1} parent=5 // pred_region
        %s1268 = ssub.s32 %s16, 2
        // Predicated region
        $region53: #{tpu_custom_call.1} parent=51 // pred_check
          %p1269 = pneg %p134
        $region54: #{tpu_custom_call.1} parent=51 // pred_check_branch
          %1271 = sbr.rel (%p1269) target = $region56
        $region55: #{tpu_custom_call.1} parent=51 // pred_region
          %s1272 = sand.u32 %s119, 1
          %s1273 = scalar_lea.sflag [#allocation3], %s1272
          %s1274 = sand.u32 %s119, 1
          %s1275 = smul.addr %s1274, 64
          %s1276 = scalar_lea.vmem [#allocation2], %s1275
          %1278 = dma.done %s1273, 1024
        $region56: #{tpu_custom_call.1} parent=51 // pred_fallthru
          _
        // Predicated region
        $region57: #{tpu_custom_call.1} parent=51 // pred_check
          %p1279 = pneg %p160
        $region58: #{tpu_custom_call.1} parent=51 // pred_check_branch
          %1281 = sbr.rel (%p1279) target = $region60
        $region59: #{tpu_custom_call.1} parent=51 // pred_region
          %s1282 = smul.u32 16, %s22
          %p1283 = scmp.lt.s32.totalorder %s1282, 31
          %s1284 = scalar_select %p1283, %s1282, 31
          %s1285 = smul.addr %s1284, 8
          %s1286 = scalar_lea.vmem %s5, %s1285
        $region60: #{tpu_custom_call.1} parent=51 // pred_fallthru
          _
        // Predicated region
        $region61: #{tpu_custom_call.1} parent=51 // pred_check
          %p1287 = pneg %p186
        $region62: #{tpu_custom_call.1} parent=51 // pred_check_branch
          %1289 = sbr.rel (%p1287) target = $region64
        $region63: #{tpu_custom_call.1} parent=51 // pred_region
          %s1290 = smul.u32 16, %s22
          %p1291 = scmp.lt.s32.totalorder %s1290, 31
          %s1292 = scalar_select %p1291, %s1290, 31
          %s1293 = smul.addr %s1292, 8
          %s1294 = scalar_lea.vmem %s6, %s1293
        $region64: #{tpu_custom_call.1} parent=51 // pred_fallthru
          _
      $region52: #{tpu_custom_call.1} parent=5 // pred_fallthru
        _
    $region6: #{tpu_custom_call.1} parent=1 // loop_footer
      %s20 = sadd.s32 1, %s16
    $region7: #{tpu_custom_call.1} parent=1 // loop_footer_branch
      %15 = sbr.rel target = $region3
    $region8: #{tpu_custom_call.1} parent=1 // loop_exit
      _
    %1295 = vsyncpa [#allocation3], 1
    %s1296 = scalar_lea.sflag [#allocation3], 1
    %1297 = vsyncpa %s1296, 1

</llo_original>
